<compile_context>
chip_gen: v5e
topology: v5e:2x2
jax: 0.10.0
libtpu: 0.0.40
codegen_flags: <defaults>
</compile_context>

<pallas_src>
import jax
import jax.numpy as jnp
from jax import lax
from jax.experimental import pallas as pl
from jax.experimental.pallas import tpu as pltpu


def _round_up(x, m):
    return ((x + m - 1) // m) * m


def make_rnn_kernel(num_layers, seq_len, batch_p, unroll=4):
    """Kernel factory; num_layers / seq_len / padded batch are static."""
    multi = num_layers > 1
    f32 = jnp.float32
    bf16 = jnp.bfloat16

    def kernel(*refs):
        if multi:
            (x_ref, w_ih0_ref, b0_ref, w_hh_ref,
             w_ih_rest_ref, b_rest_ref, w_fc_ref, b_fc_ref,
             out_ref, x0_ref) = refs
        else:
            (x_ref, w_ih0_ref, b0_ref, w_hh_ref,
             w_fc_ref, b_fc_ref, out_ref, x0_ref) = refs

        hp = w_hh_ref.shape[-1]

        # --- Pre-pass (no sequential dependency): layer-0 input projection for
        # all timesteps as one (seq*bp, kp) x (kp, hp) bf16 GEMM with f32
        # accumulation; summed layer-0 bias folded in.  Stored bf16 in VMEM. ---
        x0 = (jnp.dot(x_ref[...], w_ih0_ref[...], preferred_element_type=f32)
              + b0_ref[...])
        x0_ref[...] = x0.reshape(seq_len, batch_p, hp).astype(bf16)

        def step(t, hs):
            # Layer 0: only the recurrent h @ W_hh matmul is on the serial path.
            h0 = jnp.tanh(
                x0_ref[t].astype(f32)
                + jnp.dot(hs[0].astype(bf16), w_hh_ref[0],
                          preferred_element_type=f32))
            new_hs = [h0]
            inp = h0
            for l in range(1, num_layers):
                # Two dots (no concat): removes the per-step (bp, 2*hp) copy
                # from the serial critical path.  Weights are read straight
                # from their VMEM refs so they are never kept live in vregs
                # across loop iterations.
                pre = (jnp.dot(inp.astype(bf16), w_ih_rest_ref[l - 1],
                               preferred_element_type=f32)
                       + jnp.dot(hs[l].astype(bf16), w_hh_ref[l],
                                 preferred_element_type=f32)
                       + b_rest_ref[l - 1])          # pre-broadcast (bp, hp)
                h_new = jnp.tanh(pre)
                new_hs.append(h_new)
                inp = h_new
            return tuple(new_hs)

        hs0 = tuple(jnp.zeros((batch_p, hp), f32) for _ in range(num_layers))
        unroll_amt = seq_len if seq_len <= 16 else unroll
        hs = lax.fori_loop(0, seq_len, step, hs0, unroll=unroll_amt)

        # fc(out[-1]): top-layer hidden state at the final timestep.
        out_ref[...] = (
            jnp.dot(hs[num_layers - 1].astype(bf16), w_fc_ref[...],
                    preferred_element_type=f32)
            + b_fc_ref[...]).astype(out_ref.dtype)

    return kernel


def rnn_model_forward(x, params, num_layers):
    """x: (seq, batch, k) float32 -> (batch, num_classes) float32."""
    seq_len, batch, k = x.shape
    h = params["w_hh"].shape[-1]
    num_classes = params["w_fc"].shape[-1]

    # Padding targets: 128 lanes, 8 sublanes.  All padding is zeros, so padded
    # hidden lanes stay exactly zero and padded batch rows are sliced off.
    bp = _round_up(batch, 8)
    kp = _round_up(k, 128)
    hp = _round_up(h, 128)
    cp = _round_up(num_classes, 128)

    f32, bf16 = jnp.float32, jnp.bfloat16

    def pad2(a, r, c, dt):
        a = a.astype(f32)
        return jnp.pad(a, ((0, r - a.shape[0]), (0, c - a.shape[1]))).astype(dt)

    # x: (seq, batch, k) -> padded, flattened to (seq*bp, kp), bf16 MXU operand.
    x_p = jnp.pad(x.astype(f32), ((0, 0), (0, bp - batch), (0, kp - k)))
    x_p = x_p.reshape(seq_len * bp, kp).astype(bf16)

    w_ih0_p = pad2(params["w_ih0"], kp, hp, bf16)                        # (kp, hp)
    b0_p = pad2(params["b_ih"][0] + params["b_hh"][0], 1, hp, f32)       # (1, hp)
    w_hh_p = jnp.stack(
        [pad2(params["w_hh"][l], hp, hp, bf16) for l in range(num_layers)],
        axis=0)                                                          # (L, hp, hp)

    args = [x_p, w_ih0_p, b0_p, w_hh_p]
    if num_layers > 1:
        w_ih_rest_p = jnp.stack(
            [pad2(params["w_ih_rest"][l - 1], hp, hp, bf16)
             for l in range(1, num_layers)], axis=0)                     # (L-1, hp, hp)
        # Biases pre-broadcast to (bp, hp) so no broadcast is re-emitted inside
        # the time loop.
        b_rest_p = jnp.stack(
            [jnp.broadcast_to(
                pad2(params["b_ih"][l] + params["b_hh"][l], 1, hp, f32), (bp, hp))
             for l in range(1, num_layers)], axis=0)                     # (L-1, bp, hp)
        args += [w_ih_rest_p, b_rest_p]

    args.append(pad2(params["w_fc"], hp, cp, bf16))                      # (hp, cp)
    args.append(pad2(params["b_fc"], 1, cp, f32))                        # (1, cp)

    # Scoped-VMEM limit sized to the real footprint (inputs + x0 scratch + out),
    # with margin, capped at physical VMEM.
    scratch_bytes = seq_len * bp * hp * 2          # bf16 x0 scratch
    out_bytes = bp * cp * 4
    arg_bytes = sum(int(a.size) * a.dtype.itemsize for a in args)
    vmem_limit = int(min(128 << 20,
                         max(32 << 20,
                             2 * (arg_bytes + scratch_bytes + out_bytes) + (8 << 20))))

    kernel = make_rnn_kernel(num_layers, seq_len, bp, unroll=4)
    vmem = pl.BlockSpec(memory_space=pltpu.MemorySpace.VMEM)

    out_p = pl.pallas_call(
        kernel,
        out_shape=jax.ShapeDtypeStruct((bp, cp), f32),
        in_specs=[vmem] * len(args),
        out_specs=vmem,
        # VMEM scratch holding the precomputed x @ W_ih0 + b0 for all timesteps.
        scratch_shapes=[pltpu.VMEM((seq_len, bp, hp), bf16)],
        compiler_params=pltpu.CompilerParams(vmem_limit_bytes=vmem_limit),
    )(*args)

    return out_p[:batch, :num_classes]


def init_params(key, k, h, num_layers, num_classes):
    """Deterministic synthetic init matching PyTorch shapes (weights pre-transposed)."""
    bound = 1.0 / jnp.sqrt(jnp.float32(h))
    keys = jax.random.split(key, 7)
    u = lambda kk, shape: jax.random.uniform(kk, shape, jnp.float32, -bound, bound)
    return {
        "w_ih0": u(keys[0], (k, h)),                          # layer 0 input->hidden
        "w_ih_rest": u(keys[1], (max(num_layers - 1, 0), h, h)),
        "w_hh": u(keys[2], (num_layers, h, h)),
        "b_ih": u(keys[3], (num_layers, 1, h)),
        "b_hh": u(keys[4], (num_layers, 1, h)),
        "w_fc": u(keys[5], (h, num_classes)),
        "b_fc": u(keys[6], (1, num_classes)),
    }


def reference_forward(x, params, num_layers):
    """Pure-JAX f32 reference of the PyTorch semantics for verification."""
    seq_len, batch, k = x.shape
    h = params["w_hh"].shape[-1]
    h_state = jnp.zeros((num_layers, batch, h), jnp.float32)
    for t in range(seq_len):
        inp = x[t]
        new_states = []
        for layer in range(num_layers):
            w_ih = params["w_ih0"] if layer == 0 else params["w_ih_rest"][layer - 1]
            pre = (inp @ w_ih + params["b_ih"][layer]
                   + h_state[layer] @ params["w_hh"][layer] + params["b_hh"][layer])
            hn = jnp.tanh(pre)
            new_states.append(hn)
            inp = hn
        h_state = jnp.stack(new_states, axis=0)
    return h_state[-1] @ params["w_fc"] + params["b_fc"]


if __name__ == "__main__":
    # Small shapes consistent with the module: nn.RNN(k, h, num_layers) + Linear(h, C)
    seq_len, batch = 8, 4
    k, h, num_layers, num_classes = 16, 32, 2, 10

    key = jax.random.PRNGKey(0)
    kx, kparams = jax.random.split(key)
    x = jax.random.normal(kx, (seq_len, batch, k), jnp.float32)
    params = init_params(kparams, k, h, num_layers, num_classes)

    forward = jax.jit(rnn_model_forward, static_argnums=2)
    out = jax.block_until_ready(forward(x, params, num_layers))

    ref = reference_forward(x, params, num_layers)
    assert out.shape == (batch, num_classes)
    # Tolerance loosened for bf16 MXU operands (accumulation stays f32).
    assert jnp.allclose(out, ref, atol=5e-2, rtol=5e-2), "mismatch vs JAX reference"

    print("KERNEL_OK")
</pallas_src>

<mosaic_0001>
module attributes {stable_mosaic.version = 11 : i64} {
  func.func @kernel(%arg0: memref<64x128xbf16, #tpu.memory_space<vmem>>, %arg1: memref<128x128xbf16, #tpu.memory_space<vmem>>, %arg2: memref<1x128xf32, #tpu.memory_space<vmem>>, %arg3: memref<2x128x128xbf16, #tpu.memory_space<vmem>>, %arg4: memref<1x128x128xbf16, #tpu.memory_space<vmem>>, %arg5: memref<1x8x128xf32, #tpu.memory_space<vmem>>, %arg6: memref<128x128xbf16, #tpu.memory_space<vmem>>, %arg7: memref<1x128xf32, #tpu.memory_space<vmem>>, %arg8: memref<8x128xf32, #tpu.memory_space<vmem>>, %arg9: memref<8x8x128xbf16, #tpu.memory_space<vmem>>) attributes {dimension_semantics = [], scalar_prefetch = 0 : i64, scratch_operands = 1 : i64, tpu.core_type = #tpu.core_type<tc>} {
    %c0 = arith.constant 0 : index
    %c0_0 = arith.constant 0 : index
    %0 = vector.load %arg0[%c0, %c0_0] : memref<64x128xbf16, #tpu.memory_space<vmem>>, vector<64x128xbf16>
    %c0_1 = arith.constant 0 : index
    %c0_2 = arith.constant 0 : index
    %1 = vector.load %arg1[%c0_1, %c0_2] : memref<128x128xbf16, #tpu.memory_space<vmem>>, vector<128x128xbf16>
    %cst = arith.constant dense<0.000000e+00> : vector<64x128xf32>
    %2 = tpu.matmul %0, %1, %cst {dimension_numbers = #tpu.dot_dimension_numbers<[1], [0], [0], [1], [0, 0, 1, 1], [], []>} : vector<64x128xbf16>, vector<128x128xbf16>, vector<64x128xf32> -> vector<64x128xf32>
    %c0_3 = arith.constant 0 : index
    %c0_4 = arith.constant 0 : index
    %3 = vector.load %arg2[%c0_3, %c0_4] : memref<1x128xf32, #tpu.memory_space<vmem>>, vector<1x128xf32>
    %4 = vector.broadcast %3 : vector<1x128xf32> to vector<64x128xf32>
    %5 = arith.addf %2, %4 : vector<64x128xf32>
    %6 = vector.shape_cast %5 : vector<64x128xf32> to vector<8x8x128xf32>
    %7 = arith.truncf %6 : vector<8x8x128xf32> to vector<8x8x128xbf16>
    %c0_5 = arith.constant 0 : index
    %c0_6 = arith.constant 0 : index
    %c0_7 = arith.constant 0 : index
    %8 = vector.load %arg9[%c0_5, %c0_6, %c0_7] : memref<8x8x128xbf16, #tpu.memory_space<vmem>>, vector<8x8x128xbf16>
    tpu.vector_store %arg9[%c0_5, %c0_6, %c0_7], %7 {strides = array<i32>} : memref<8x8x128xbf16, #tpu.memory_space<vmem>>, vector<8x8x128xbf16>,
    %cst_8 = arith.constant 0.000000e+00 : f32
    %9 = vector.broadcast %cst_8 : f32 to vector<8x128xf32>
    %cst_9 = arith.constant 0.000000e+00 : f32
    %10 = vector.broadcast %cst_9 : f32 to vector<8x128xf32>
    %c0_i32 = arith.constant 0 : i32
    %11 = arith.index_cast %c0_i32 : i32 to index
    %c0_10 = arith.constant 0 : index
    %c0_11 = arith.constant 0 : index
    %12 = vector.load %arg9[%11, %c0_10, %c0_11] : memref<8x8x128xbf16, #tpu.memory_space<vmem>>, vector<1x8x128xbf16>
    %13 = vector.shape_cast %12 : vector<1x8x128xbf16> to vector<8x128xbf16>
    %14 = arith.extf %13 : vector<8x128xbf16> to vector<8x128xf32>
    %15 = arith.truncf %9 : vector<8x128xf32> to vector<8x128xbf16>
    %c0_12 = arith.constant 0 : index
    %c0_13 = arith.constant 0 : index
    %c0_14 = arith.constant 0 : index
    %16 = vector.load %arg3[%c0_12, %c0_13, %c0_14] : memref<2x128x128xbf16, #tpu.memory_space<vmem>>, vector<1x128x128xbf16>
    %17 = vector.shape_cast %16 : vector<1x128x128xbf16> to vector<128x128xbf16>
    %cst_15 = arith.constant dense<0.000000e+00> : vector<8x128xf32>
    %18 = tpu.matmul %15, %17, %cst_15 {dimension_numbers = #tpu.dot_dimension_numbers<[1], [0], [0], [1], [0, 0, 1, 1], [], []>} : vector<8x128xbf16>, vector<128x128xbf16>, vector<8x128xf32> -> vector<8x128xf32>
    %19 = arith.addf %14, %18 : vector<8x128xf32>
    %20 = math.tanh %19 : vector<8x128xf32>
    %21 = arith.truncf %20 : vector<8x128xf32> to vector<8x128xbf16>
    %c0_16 = arith.constant 0 : index
    %c0_17 = arith.constant 0 : index
    %c0_18 = arith.constant 0 : index
    %22 = vector.load %arg4[%c0_16, %c0_17, %c0_18] : memref<1x128x128xbf16, #tpu.memory_space<vmem>>, vector<1x128x128xbf16>
    %23 = vector.shape_cast %22 : vector<1x128x128xbf16> to vector<128x128xbf16>
    %cst_19 = arith.constant dense<0.000000e+00> : vector<8x128xf32>
    %24 = tpu.matmul %21, %23, %cst_19 {dimension_numbers = #tpu.dot_dimension_numbers<[1], [0], [0], [1], [0, 0, 1, 1], [], []>} : vector<8x128xbf16>, vector<128x128xbf16>, vector<8x128xf32> -> vector<8x128xf32>
    %25 = arith.truncf %10 : vector<8x128xf32> to vector<8x128xbf16>
    %c1 = arith.constant 1 : index
    %c0_20 = arith.constant 0 : index
    %c0_21 = arith.constant 0 : index
    %26 = vector.load %arg3[%c1, %c0_20, %c0_21] : memref<2x128x128xbf16, #tpu.memory_space<vmem>>, vector<1x128x128xbf16>
    %27 = vector.shape_cast %26 : vector<1x128x128xbf16> to vector<128x128xbf16>
    %cst_22 = arith.constant dense<0.000000e+00> : vector<8x128xf32>
    %28 = tpu.matmul %25, %27, %cst_22 {dimension_numbers = #tpu.dot_dimension_numbers<[1], [0], [0], [1], [0, 0, 1, 1], [], []>} : vector<8x128xbf16>, vector<128x128xbf16>, vector<8x128xf32> -> vector<8x128xf32>
    %29 = arith.addf %24, %28 : vector<8x128xf32>
    %c0_23 = arith.constant 0 : index
    %c0_24 = arith.constant 0 : index
    %c0_25 = arith.constant 0 : index
    %30 = vector.load %arg5[%c0_23, %c0_24, %c0_25] : memref<1x8x128xf32, #tpu.memory_space<vmem>>, vector<1x8x128xf32>
    %31 = vector.shape_cast %30 : vector<1x8x128xf32> to vector<8x128xf32>
    %32 = arith.addf %29, %31 : vector<8x128xf32>
    %33 = math.tanh %32 : vector<8x128xf32>
    %c1_i32 = arith.constant 1 : i32
    %34 = arith.index_cast %c1_i32 : i32 to index
    %c0_26 = arith.constant 0 : index
    %c0_27 = arith.constant 0 : index
    %35 = vector.load %arg9[%34, %c0_26, %c0_27] : memref<8x8x128xbf16, #tpu.memory_space<vmem>>, vector<1x8x128xbf16>
    %36 = vector.shape_cast %35 : vector<1x8x128xbf16> to vector<8x128xbf16>
    %37 = arith.extf %36 : vector<8x128xbf16> to vector<8x128xf32>
    %38 = arith.truncf %20 : vector<8x128xf32> to vector<8x128xbf16>
    %c0_28 = arith.constant 0 : index
    %c0_29 = arith.constant 0 : index
    %c0_30 = arith.constant 0 : index
    %39 = vector.load %arg3[%c0_28, %c0_29, %c0_30] : memref<2x128x128xbf16, #tpu.memory_space<vmem>>, vector<1x128x128xbf16>
    %40 = vector.shape_cast %39 : vector<1x128x128xbf16> to vector<128x128xbf16>
    %cst_31 = arith.constant dense<0.000000e+00> : vector<8x128xf32>
    %41 = tpu.matmul %38, %40, %cst_31 {dimension_numbers = #tpu.dot_dimension_numbers<[1], [0], [0], [1], [0, 0, 1, 1], [], []>} : vector<8x128xbf16>, vector<128x128xbf16>, vector<8x128xf32> -> vector<8x128xf32>
    %42 = arith.addf %37, %41 : vector<8x128xf32>
    %43 = math.tanh %42 : vector<8x128xf32>
    %44 = arith.truncf %43 : vector<8x128xf32> to vector<8x128xbf16>
    %c0_32 = arith.constant 0 : index
    %c0_33 = arith.constant 0 : index
    %c0_34 = arith.constant 0 : index
    %45 = vector.load %arg4[%c0_32, %c0_33, %c0_34] : memref<1x128x128xbf16, #tpu.memory_space<vmem>>, vector<1x128x128xbf16>
    %46 = vector.shape_cast %45 : vector<1x128x128xbf16> to vector<128x128xbf16>
    %cst_35 = arith.constant dense<0.000000e+00> : vector<8x128xf32>
    %47 = tpu.matmul %44, %46, %cst_35 {dimension_numbers = #tpu.dot_dimension_numbers<[1], [0], [0], [1], [0, 0, 1, 1], [], []>} : vector<8x128xbf16>, vector<128x128xbf16>, vector<8x128xf32> -> vector<8x128xf32>
    %48 = arith.truncf %33 : vector<8x128xf32> to vector<8x128xbf16>
    %c1_36 = arith.constant 1 : index
    %c0_37 = arith.constant 0 : index
    %c0_38 = arith.constant 0 : index
    %49 = vector.load %arg3[%c1_36, %c0_37, %c0_38] : memref<2x128x128xbf16, #tpu.memory_space<vmem>>, vector<1x128x128xbf16>
    %50 = vector.shape_cast %49 : vector<1x128x128xbf16> to vector<128x128xbf16>
    %cst_39 = arith.constant dense<0.000000e+00> : vector<8x128xf32>
    %51 = tpu.matmul %48, %50, %cst_39 {dimension_numbers = #tpu.dot_dimension_numbers<[1], [0], [0], [1], [0, 0, 1, 1], [], []>} : vector<8x128xbf16>, vector<128x128xbf16>, vector<8x128xf32> -> vector<8x128xf32>
    %52 = arith.addf %47, %51 : vector<8x128xf32>
    %c0_40 = arith.constant 0 : index
    %c0_41 = arith.constant 0 : index
    %c0_42 = arith.constant 0 : index
    %53 = vector.load %arg5[%c0_40, %c0_41, %c0_42] : memref<1x8x128xf32, #tpu.memory_space<vmem>>, vector<1x8x128xf32>
    %54 = vector.shape_cast %53 : vector<1x8x128xf32> to vector<8x128xf32>
    %55 = arith.addf %52, %54 : vector<8x128xf32>
    %56 = math.tanh %55 : vector<8x128xf32>
    %c2_i32 = arith.constant 2 : i32
    %57 = arith.index_cast %c2_i32 : i32 to index
    %c0_43 = arith.constant 0 : index
    %c0_44 = arith.constant 0 : index
    %58 = vector.load %arg9[%57, %c0_43, %c0_44] : memref<8x8x128xbf16, #tpu.memory_space<vmem>>, vector<1x8x128xbf16>
    %59 = vector.shape_cast %58 : vector<1x8x128xbf16> to vector<8x128xbf16>
    %60 = arith.extf %59 : vector<8x128xbf16> to vector<8x128xf32>
    %61 = arith.truncf %43 : vector<8x128xf32> to vector<8x128xbf16>
    %c0_45 = arith.constant 0 : index
    %c0_46 = arith.constant 0 : index
    %c0_47 = arith.constant 0 : index
    %62 = vector.load %arg3[%c0_45, %c0_46, %c0_47] : memref<2x128x128xbf16, #tpu.memory_space<vmem>>, vector<1x128x128xbf16>
    %63 = vector.shape_cast %62 : vector<1x128x128xbf16> to vector<128x128xbf16>
    %cst_48 = arith.constant dense<0.000000e+00> : vector<8x128xf32>
    %64 = tpu.matmul %61, %63, %cst_48 {dimension_numbers = #tpu.dot_dimension_numbers<[1], [0], [0], [1], [0, 0, 1, 1], [], []>} : vector<8x128xbf16>, vector<128x128xbf16>, vector<8x128xf32> -> vector<8x128xf32>
    %65 = arith.addf %60, %64 : vector<8x128xf32>
    %66 = math.tanh %65 : vector<8x128xf32>
    %67 = arith.truncf %66 : vector<8x128xf32> to vector<8x128xbf16>
    %c0_49 = arith.constant 0 : index
    %c0_50 = arith.constant 0 : index
    %c0_51 = arith.constant 0 : index
    %68 = vector.load %arg4[%c0_49, %c0_50, %c0_51] : memref<1x128x128xbf16, #tpu.memory_space<vmem>>, vector<1x128x128xbf16>
    %69 = vector.shape_cast %68 : vector<1x128x128xbf16> to vector<128x128xbf16>
    %cst_52 = arith.constant dense<0.000000e+00> : vector<8x128xf32>
    %70 = tpu.matmul %67, %69, %cst_52 {dimension_numbers = #tpu.dot_dimension_numbers<[1], [0], [0], [1], [0, 0, 1, 1], [], []>} : vector<8x128xbf16>, vector<128x128xbf16>, vector<8x128xf32> -> vector<8x128xf32>
    %71 = arith.truncf %56 : vector<8x128xf32> to vector<8x128xbf16>
    %c1_53 = arith.constant 1 : index
    %c0_54 = arith.constant 0 : index
    %c0_55 = arith.constant 0 : index
    %72 = vector.load %arg3[%c1_53, %c0_54, %c0_55] : memref<2x128x128xbf16, #tpu.memory_space<vmem>>, vector<1x128x128xbf16>
    %73 = vector.shape_cast %72 : vector<1x128x128xbf16> to vector<128x128xbf16>
    %cst_56 = arith.constant dense<0.000000e+00> : vector<8x128xf32>
    %74 = tpu.matmul %71, %73, %cst_56 {dimension_numbers = #tpu.dot_dimension_numbers<[1], [0], [0], [1], [0, 0, 1, 1], [], []>} : vector<8x128xbf16>, vector<128x128xbf16>, vector<8x128xf32> -> vector<8x128xf32>
    %75 = arith.addf %70, %74 : vector<8x128xf32>
    %c0_57 = arith.constant 0 : index
    %c0_58 = arith.constant 0 : index
    %c0_59 = arith.constant 0 : index
    %76 = vector.load %arg5[%c0_57, %c0_58, %c0_59] : memref<1x8x128xf32, #tpu.memory_space<vmem>>, vector<1x8x128xf32>
    %77 = vector.shape_cast %76 : vector<1x8x128xf32> to vector<8x128xf32>
    %78 = arith.addf %75, %77 : vector<8x128xf32>
    %79 = math.tanh %78 : vector<8x128xf32>
    %c3_i32 = arith.constant 3 : i32
    %80 = arith.index_cast %c3_i32 : i32 to index
    %c0_60 = arith.constant 0 : index
    %c0_61 = arith.constant 0 : index
    %81 = vector.load %arg9[%80, %c0_60, %c0_61] : memref<8x8x128xbf16, #tpu.memory_space<vmem>>, vector<1x8x128xbf16>
    %82 = vector.shape_cast %81 : vector<1x8x128xbf16> to vector<8x128xbf16>
    %83 = arith.extf %82 : vector<8x128xbf16> to vector<8x128xf32>
    %84 = arith.truncf %66 : vector<8x128xf32> to vector<8x128xbf16>
    %c0_62 = arith.constant 0 : index
    %c0_63 = arith.constant 0 : index
    %c0_64 = arith.constant 0 : index
    %85 = vector.load %arg3[%c0_62, %c0_63, %c0_64] : memref<2x128x128xbf16, #tpu.memory_space<vmem>>, vector<1x128x128xbf16>
    %86 = vector.shape_cast %85 : vector<1x128x128xbf16> to vector<128x128xbf16>
    %cst_65 = arith.constant dense<0.000000e+00> : vector<8x128xf32>
    %87 = tpu.matmul %84, %86, %cst_65 {dimension_numbers = #tpu.dot_dimension_numbers<[1], [0], [0], [1], [0, 0, 1, 1], [], []>} : vector<8x128xbf16>, vector<128x128xbf16>, vector<8x128xf32> -> vector<8x128xf32>
    %88 = arith.addf %83, %87 : vector<8x128xf32>
    %89 = math.tanh %88 : vector<8x128xf32>
    %90 = arith.truncf %89 : vector<8x128xf32> to vector<8x128xbf16>
    %c0_66 = arith.constant 0 : index
    %c0_67 = arith.constant 0 : index
    %c0_68 = arith.constant 0 : index
    %91 = vector.load %arg4[%c0_66, %c0_67, %c0_68] : memref<1x128x128xbf16, #tpu.memory_space<vmem>>, vector<1x128x128xbf16>
    %92 = vector.shape_cast %91 : vector<1x128x128xbf16> to vector<128x128xbf16>
    %cst_69 = arith.constant dense<0.000000e+00> : vector<8x128xf32>
    %93 = tpu.matmul %90, %92, %cst_69 {dimension_numbers = #tpu.dot_dimension_numbers<[1], [0], [0], [1], [0, 0, 1, 1], [], []>} : vector<8x128xbf16>, vector<128x128xbf16>, vector<8x128xf32> -> vector<8x128xf32>
    %94 = arith.truncf %79 : vector<8x128xf32> to vector<8x128xbf16>
    %c1_70 = arith.constant 1 : index
    %c0_71 = arith.constant 0 : index
    %c0_72 = arith.constant 0 : index
    %95 = vector.load %arg3[%c1_70, %c0_71, %c0_72] : memref<2x128x128xbf16, #tpu.memory_space<vmem>>, vector<1x128x128xbf16>
    %96 = vector.shape_cast %95 : vector<1x128x128xbf16> to vector<128x128xbf16>
    %cst_73 = arith.constant dense<0.000000e+00> : vector<8x128xf32>
    %97 = tpu.matmul %94, %96, %cst_73 {dimension_numbers = #tpu.dot_dimension_numbers<[1], [0], [0], [1], [0, 0, 1, 1], [], []>} : vector<8x128xbf16>, vector<128x128xbf16>, vector<8x128xf32> -> vector<8x128xf32>
    %98 = arith.addf %93, %97 : vector<8x128xf32>
    %c0_74 = arith.constant 0 : index
    %c0_75 = arith.constant 0 : index
    %c0_76 = arith.constant 0 : index
    %99 = vector.load %arg5[%c0_74, %c0_75, %c0_76] : memref<1x8x128xf32, #tpu.memory_space<vmem>>, vector<1x8x128xf32>
    %100 = vector.shape_cast %99 : vector<1x8x128xf32> to vector<8x128xf32>
    %101 = arith.addf %98, %100 : vector<8x128xf32>
    %102 = math.tanh %101 : vector<8x128xf32>
    %c4_i32 = arith.constant 4 : i32
    %103 = arith.index_cast %c4_i32 : i32 to index
    %c0_77 = arith.constant 0 : index
    %c0_78 = arith.constant 0 : index
    %104 = vector.load %arg9[%103, %c0_77, %c0_78] : memref<8x8x128xbf16, #tpu.memory_space<vmem>>, vector<1x8x128xbf16>
    %105 = vector.shape_cast %104 : vector<1x8x128xbf16> to vector<8x128xbf16>
    %106 = arith.extf %105 : vector<8x128xbf16> to vector<8x128xf32>
    %107 = arith.truncf %89 : vector<8x128xf32> to vector<8x128xbf16>
    %c0_79 = arith.constant 0 : index
    %c0_80 = arith.constant 0 : index
    %c0_81 = arith.constant 0 : index
    %108 = vector.load %arg3[%c0_79, %c0_80, %c0_81] : memref<2x128x128xbf16, #tpu.memory_space<vmem>>, vector<1x128x128xbf16>
    %109 = vector.shape_cast %108 : vector<1x128x128xbf16> to vector<128x128xbf16>
    %cst_82 = arith.constant dense<0.000000e+00> : vector<8x128xf32>
    %110 = tpu.matmul %107, %109, %cst_82 {dimension_numbers = #tpu.dot_dimension_numbers<[1], [0], [0], [1], [0, 0, 1, 1], [], []>} : vector<8x128xbf16>, vector<128x128xbf16>, vector<8x128xf32> -> vector<8x128xf32>
    %111 = arith.addf %106, %110 : vector<8x128xf32>
    %112 = math.tanh %111 : vector<8x128xf32>
    %113 = arith.truncf %112 : vector<8x128xf32> to vector<8x128xbf16>
    %c0_83 = arith.constant 0 : index
    %c0_84 = arith.constant 0 : index
    %c0_85 = arith.constant 0 : index
    %114 = vector.load %arg4[%c0_83, %c0_84, %c0_85] : memref<1x128x128xbf16, #tpu.memory_space<vmem>>, vector<1x128x128xbf16>
    %115 = vector.shape_cast %114 : vector<1x128x128xbf16> to vector<128x128xbf16>
    %cst_86 = arith.constant dense<0.000000e+00> : vector<8x128xf32>
    %116 = tpu.matmul %113, %115, %cst_86 {dimension_numbers = #tpu.dot_dimension_numbers<[1], [0], [0], [1], [0, 0, 1, 1], [], []>} : vector<8x128xbf16>, vector<128x128xbf16>, vector<8x128xf32> -> vector<8x128xf32>
    %117 = arith.truncf %102 : vector<8x128xf32> to vector<8x128xbf16>
    %c1_87 = arith.constant 1 : index
    %c0_88 = arith.constant 0 : index
    %c0_89 = arith.constant 0 : index
    %118 = vector.load %arg3[%c1_87, %c0_88, %c0_89] : memref<2x128x128xbf16, #tpu.memory_space<vmem>>, vector<1x128x128xbf16>
    %119 = vector.shape_cast %118 : vector<1x128x128xbf16> to vector<128x128xbf16>
    %cst_90 = arith.constant dense<0.000000e+00> : vector<8x128xf32>
    %120 = tpu.matmul %117, %119, %cst_90 {dimension_numbers = #tpu.dot_dimension_numbers<[1], [0], [0], [1], [0, 0, 1, 1], [], []>} : vector<8x128xbf16>, vector<128x128xbf16>, vector<8x128xf32> -> vector<8x128xf32>
    %121 = arith.addf %116, %120 : vector<8x128xf32>
    %c0_91 = arith.constant 0 : index
    %c0_92 = arith.constant 0 : index
    %c0_93 = arith.constant 0 : index
    %122 = vector.load %arg5[%c0_91, %c0_92, %c0_93] : memref<1x8x128xf32, #tpu.memory_space<vmem>>, vector<1x8x128xf32>
    %123 = vector.shape_cast %122 : vector<1x8x128xf32> to vector<8x128xf32>
    %124 = arith.addf %121, %123 : vector<8x128xf32>
    %125 = math.tanh %124 : vector<8x128xf32>
    %c5_i32 = arith.constant 5 : i32
    %126 = arith.index_cast %c5_i32 : i32 to index
    %c0_94 = arith.constant 0 : index
    %c0_95 = arith.constant 0 : index
    %127 = vector.load %arg9[%126, %c0_94, %c0_95] : memref<8x8x128xbf16, #tpu.memory_space<vmem>>, vector<1x8x128xbf16>
    %128 = vector.shape_cast %127 : vector<1x8x128xbf16> to vector<8x128xbf16>
    %129 = arith.extf %128 : vector<8x128xbf16> to vector<8x128xf32>
    %130 = arith.truncf %112 : vector<8x128xf32> to vector<8x128xbf16>
    %c0_96 = arith.constant 0 : index
    %c0_97 = arith.constant 0 : index
    %c0_98 = arith.constant 0 : index
    %131 = vector.load %arg3[%c0_96, %c0_97, %c0_98] : memref<2x128x128xbf16, #tpu.memory_space<vmem>>, vector<1x128x128xbf16>
    %132 = vector.shape_cast %131 : vector<1x128x128xbf16> to vector<128x128xbf16>
    %cst_99 = arith.constant dense<0.000000e+00> : vector<8x128xf32>
    %133 = tpu.matmul %130, %132, %cst_99 {dimension_numbers = #tpu.dot_dimension_numbers<[1], [0], [0], [1], [0, 0, 1, 1], [], []>} : vector<8x128xbf16>, vector<128x128xbf16>, vector<8x128xf32> -> vector<8x128xf32>
    %134 = arith.addf %129, %133 : vector<8x128xf32>
    %135 = math.tanh %134 : vector<8x128xf32>
    %136 = arith.truncf %135 : vector<8x128xf32> to vector<8x128xbf16>
    %c0_100 = arith.constant 0 : index
    %c0_101 = arith.constant 0 : index
    %c0_102 = arith.constant 0 : index
    %137 = vector.load %arg4[%c0_100, %c0_101, %c0_102] : memref<1x128x128xbf16, #tpu.memory_space<vmem>>, vector<1x128x128xbf16>
    %138 = vector.shape_cast %137 : vector<1x128x128xbf16> to vector<128x128xbf16>
    %cst_103 = arith.constant dense<0.000000e+00> : vector<8x128xf32>
    %139 = tpu.matmul %136, %138, %cst_103 {dimension_numbers = #tpu.dot_dimension_numbers<[1], [0], [0], [1], [0, 0, 1, 1], [], []>} : vector<8x128xbf16>, vector<128x128xbf16>, vector<8x128xf32> -> vector<8x128xf32>
    %140 = arith.truncf %125 : vector<8x128xf32> to vector<8x128xbf16>
    %c1_104 = arith.constant 1 : index
    %c0_105 = arith.constant 0 : index
    %c0_106 = arith.constant 0 : index
    %141 = vector.load %arg3[%c1_104, %c0_105, %c0_106] : memref<2x128x128xbf16, #tpu.memory_space<vmem>>, vector<1x128x128xbf16>
    %142 = vector.shape_cast %141 : vector<1x128x128xbf16> to vector<128x128xbf16>
    %cst_107 = arith.constant dense<0.000000e+00> : vector<8x128xf32>
    %143 = tpu.matmul %140, %142, %cst_107 {dimension_numbers = #tpu.dot_dimension_numbers<[1], [0], [0], [1], [0, 0, 1, 1], [], []>} : vector<8x128xbf16>, vector<128x128xbf16>, vector<8x128xf32> -> vector<8x128xf32>
    %144 = arith.addf %139, %143 : vector<8x128xf32>
    %c0_108 = arith.constant 0 : index
    %c0_109 = arith.constant 0 : index
    %c0_110 = arith.constant 0 : index
    %145 = vector.load %arg5[%c0_108, %c0_109, %c0_110] : memref<1x8x128xf32, #tpu.memory_space<vmem>>, vector<1x8x128xf32>
    %146 = vector.shape_cast %145 : vector<1x8x128xf32> to vector<8x128xf32>
    %147 = arith.addf %144, %146 : vector<8x128xf32>
    %148 = math.tanh %147 : vector<8x128xf32>
    %c6_i32 = arith.constant 6 : i32
    %149 = arith.index_cast %c6_i32 : i32 to index
    %c0_111 = arith.constant 0 : index
    %c0_112 = arith.constant 0 : index
    %150 = vector.load %arg9[%149, %c0_111, %c0_112] : memref<8x8x128xbf16, #tpu.memory_space<vmem>>, vector<1x8x128xbf16>
    %151 = vector.shape_cast %150 : vector<1x8x128xbf16> to vector<8x128xbf16>
    %152 = arith.extf %151 : vector<8x128xbf16> to vector<8x128xf32>
    %153 = arith.truncf %135 : vector<8x128xf32> to vector<8x128xbf16>
    %c0_113 = arith.constant 0 : index
    %c0_114 = arith.constant 0 : index
    %c0_115 = arith.constant 0 : index
    %154 = vector.load %arg3[%c0_113, %c0_114, %c0_115] : memref<2x128x128xbf16, #tpu.memory_space<vmem>>, vector<1x128x128xbf16>
    %155 = vector.shape_cast %154 : vector<1x128x128xbf16> to vector<128x128xbf16>
    %cst_116 = arith.constant dense<0.000000e+00> : vector<8x128xf32>
    %156 = tpu.matmul %153, %155, %cst_116 {dimension_numbers = #tpu.dot_dimension_numbers<[1], [0], [0], [1], [0, 0, 1, 1], [], []>} : vector<8x128xbf16>, vector<128x128xbf16>, vector<8x128xf32> -> vector<8x128xf32>
    %157 = arith.addf %152, %156 : vector<8x128xf32>
    %158 = math.tanh %157 : vector<8x128xf32>
    %159 = arith.truncf %158 : vector<8x128xf32> to vector<8x128xbf16>
    %c0_117 = arith.constant 0 : index
    %c0_118 = arith.constant 0 : index
    %c0_119 = arith.constant 0 : index
    %160 = vector.load %arg4[%c0_117, %c0_118, %c0_119] : memref<1x128x128xbf16, #tpu.memory_space<vmem>>, vector<1x128x128xbf16>
    %161 = vector.shape_cast %160 : vector<1x128x128xbf16> to vector<128x128xbf16>
    %cst_120 = arith.constant dense<0.000000e+00> : vector<8x128xf32>
    %162 = tpu.matmul %159, %161, %cst_120 {dimension_numbers = #tpu.dot_dimension_numbers<[1], [0], [0], [1], [0, 0, 1, 1], [], []>} : vector<8x128xbf16>, vector<128x128xbf16>, vector<8x128xf32> -> vector<8x128xf32>
    %163 = arith.truncf %148 : vector<8x128xf32> to vector<8x128xbf16>
    %c1_121 = arith.constant 1 : index
    %c0_122 = arith.constant 0 : index
    %c0_123 = arith.constant 0 : index
    %164 = vector.load %arg3[%c1_121, %c0_122, %c0_123] : memref<2x128x128xbf16, #tpu.memory_space<vmem>>, vector<1x128x128xbf16>
    %165 = vector.shape_cast %164 : vector<1x128x128xbf16> to vector<128x128xbf16>
    %cst_124 = arith.constant dense<0.000000e+00> : vector<8x128xf32>
    %166 = tpu.matmul %163, %165, %cst_124 {dimension_numbers = #tpu.dot_dimension_numbers<[1], [0], [0], [1], [0, 0, 1, 1], [], []>} : vector<8x128xbf16>, vector<128x128xbf16>, vector<8x128xf32> -> vector<8x128xf32>
    %167 = arith.addf %162, %166 : vector<8x128xf32>
    %c0_125 = arith.constant 0 : index
    %c0_126 = arith.constant 0 : index
    %c0_127 = arith.constant 0 : index
    %168 = vector.load %arg5[%c0_125, %c0_126, %c0_127] : memref<1x8x128xf32, #tpu.memory_space<vmem>>, vector<1x8x128xf32>
    %169 = vector.shape_cast %168 : vector<1x8x128xf32> to vector<8x128xf32>
    %170 = arith.addf %167, %169 : vector<8x128xf32>
    %171 = math.tanh %170 : vector<8x128xf32>
    %c7_i32 = arith.constant 7 : i32
    %172 = arith.index_cast %c7_i32 : i32 to index
    %c0_128 = arith.constant 0 : index
    %c0_129 = arith.constant 0 : index
    %173 = vector.load %arg9[%172, %c0_128, %c0_129] : memref<8x8x128xbf16, #tpu.memory_space<vmem>>, vector<1x8x128xbf16>
    %174 = vector.shape_cast %173 : vector<1x8x128xbf16> to vector<8x128xbf16>
    %175 = arith.extf %174 : vector<8x128xbf16> to vector<8x128xf32>
    %176 = arith.truncf %158 : vector<8x128xf32> to vector<8x128xbf16>
    %c0_130 = arith.constant 0 : index
    %c0_131 = arith.constant 0 : index
    %c0_132 = arith.constant 0 : index
    %177 = vector.load %arg3[%c0_130, %c0_131, %c0_132] : memref<2x128x128xbf16, #tpu.memory_space<vmem>>, vector<1x128x128xbf16>
    %178 = vector.shape_cast %177 : vector<1x128x128xbf16> to vector<128x128xbf16>
    %cst_133 = arith.constant dense<0.000000e+00> : vector<8x128xf32>
    %179 = tpu.matmul %176, %178, %cst_133 {dimension_numbers = #tpu.dot_dimension_numbers<[1], [0], [0], [1], [0, 0, 1, 1], [], []>} : vector<8x128xbf16>, vector<128x128xbf16>, vector<8x128xf32> -> vector<8x128xf32>
    %180 = arith.addf %175, %179 : vector<8x128xf32>
    %181 = math.tanh %180 : vector<8x128xf32>
    %182 = arith.truncf %181 : vector<8x128xf32> to vector<8x128xbf16>
    %c0_134 = arith.constant 0 : index
    %c0_135 = arith.constant 0 : index
    %c0_136 = arith.constant 0 : index
    %183 = vector.load %arg4[%c0_134, %c0_135, %c0_136] : memref<1x128x128xbf16, #tpu.memory_space<vmem>>, vector<1x128x128xbf16>
    %184 = vector.shape_cast %183 : vector<1x128x128xbf16> to vector<128x128xbf16>
    %cst_137 = arith.constant dense<0.000000e+00> : vector<8x128xf32>
    %185 = tpu.matmul %182, %184, %cst_137 {dimension_numbers = #tpu.dot_dimension_numbers<[1], [0], [0], [1], [0, 0, 1, 1], [], []>} : vector<8x128xbf16>, vector<128x128xbf16>, vector<8x128xf32> -> vector<8x128xf32>
    %186 = arith.truncf %171 : vector<8x128xf32> to vector<8x128xbf16>
    %c1_138 = arith.constant 1 : index
    %c0_139 = arith.constant 0 : index
    %c0_140 = arith.constant 0 : index
    %187 = vector.load %arg3[%c1_138, %c0_139, %c0_140] : memref<2x128x128xbf16, #tpu.memory_space<vmem>>, vector<1x128x128xbf16>
    %188 = vector.shape_cast %187 : vector<1x128x128xbf16> to vector<128x128xbf16>
    %cst_141 = arith.constant dense<0.000000e+00> : vector<8x128xf32>
    %189 = tpu.matmul %186, %188, %cst_141 {dimension_numbers = #tpu.dot_dimension_numbers<[1], [0], [0], [1], [0, 0, 1, 1], [], []>} : vector<8x128xbf16>, vector<128x128xbf16>, vector<8x128xf32> -> vector<8x128xf32>
    %190 = arith.addf %185, %189 : vector<8x128xf32>
    %c0_142 = arith.constant 0 : index
    %c0_143 = arith.constant 0 : index
    %c0_144 = arith.constant 0 : index
    %191 = vector.load %arg5[%c0_142, %c0_143, %c0_144] : memref<1x8x128xf32, #tpu.memory_space<vmem>>, vector<1x8x128xf32>
    %192 = vector.shape_cast %191 : vector<1x8x128xf32> to vector<8x128xf32>
    %193 = arith.addf %190, %192 : vector<8x128xf32>
    %194 = math.tanh %193 : vector<8x128xf32>
    %c8_i32 = arith.constant 8 : i32
    %195 = arith.truncf %194 : vector<8x128xf32> to vector<8x128xbf16>
    %c0_145 = arith.constant 0 : index
    %c0_146 = arith.constant 0 : index
    %196 = vector.load %arg6[%c0_145, %c0_146] : memref<128x128xbf16, #tpu.memory_space<vmem>>, vector<128x128xbf16>
    %cst_147 = arith.constant dense<0.000000e+00> : vector<8x128xf32>
    %197 = tpu.matmul %195, %196, %cst_147 {dimension_numbers = #tpu.dot_dimension_numbers<[1], [0], [0], [1], [0, 0, 1, 1], [], []>} : vector<8x128xbf16>, vector<128x128xbf16>, vector<8x128xf32> -> vector<8x128xf32>
    %c0_148 = arith.constant 0 : index
    %c0_149 = arith.constant 0 : index
    %198 = vector.load %arg7[%c0_148, %c0_149] : memref<1x128xf32, #tpu.memory_space<vmem>>, vector<1x128xf32>
    %199 = vector.broadcast %198 : vector<1x128xf32> to vector<8x128xf32>
    %200 = arith.addf %197, %199 : vector<8x128xf32>
    %c0_150 = arith.constant 0 : index
    %c0_151 = arith.constant 0 : index
    %201 = vector.load %arg8[%c0_150, %c0_151] : memref<8x128xf32, #tpu.memory_space<vmem>>, vector<8x128xf32>
    tpu.vector_store %arg8[%c0_150, %c0_151], %200 {strides = array<i32>} : memref<8x128xf32, #tpu.memory_space<vmem>>, vector<8x128xf32>,
    return
  }
}

</mosaic_0001>

<llo_original>
// kernel: rnn_model_forward.1
$region0: #{rnn_model_forward.1}
  #allocation0 [shape = 'u32[]', space=smem, size = 0x4, offset = 0x4, fixed_abs, tag = 'smem constant byte address 0x4 - core index']
  #allocation1 [shape = 'u32[72,128]{1,0:T(1,128)}', space=vmem, size = 0x9000, scoped, tag = 'internal scratch']
  #allocation2 [shape = 'bf16[8,8,128]{2,1,0:T(8,128)(2,1)}', space=vmem, size = 0x4000, scoped, tag = 'scratch operand']
  %s0 = inlined_call_operand.vmem [shape: bf16[64,128], index: 0, kind: input, shape index: {}]
  %s1 = inlined_call_operand.vmem [shape: bf16[128,128], index: 1, kind: input, shape index: {}]
  %s2 = inlined_call_operand.vmem [shape: f32[1,128], index: 2, kind: input, shape index: {}]
  %s3 = inlined_call_operand.vmem [shape: bf16[2,128,128], index: 3, kind: input, shape index: {}]
  %s4 = inlined_call_operand.vmem [shape: bf16[1,128,128], index: 4, kind: input, shape index: {}]
  %s5 = inlined_call_operand.vmem [shape: f32[1,8,128], index: 5, kind: input, shape index: {}]
  %s6 = inlined_call_operand.vmem [shape: bf16[128,128], index: 6, kind: input, shape index: {}]
  %s7 = inlined_call_operand.vmem [shape: f32[1,128], index: 7, kind: input, shape index: {}]
  %s8 = inlined_call_operand.vmem [shape: f32[8,128], index: 8, kind: output, shape index: {}]
  %s9 = sld [smem:[#allocation0]]
  $region42: #{rnn_model_forward.1} parent=0
    _
  %s11 = ssub.s32 1, %s9
  %s12 = scalar_select 0, %s11, %s9
  // Predicated region
  $region2: #{rnn_model_forward.1} parent=0 // pred_check
    _
  $region3: #{rnn_model_forward.1} parent=0 // pred_check_branch
    %14 = sbr.rel (0) target = $region5
  $region4: #{rnn_model_forward.1} parent=0 // pred_region
    _
  $region5: #{rnn_model_forward.1} parent=0 // pred_fallthru
    _
  // Predicated region
  $region6: #{rnn_model_forward.1} parent=0 // pred_check
    _
  $region7: #{rnn_model_forward.1} parent=0 // pred_check_branch
    %16 = sbr.rel (0) target = $region9
  $region8: #{rnn_model_forward.1} parent=0 // pred_region
    _
  $region9: #{rnn_model_forward.1} parent=0 // pred_fallthru
    _
  // Predicated region
  $region10: #{rnn_model_forward.1} parent=0 // pred_check
    _
  $region11: #{rnn_model_forward.1} parent=0 // pred_check_branch
    %18 = sbr.rel (0) target = $region13
  $region12: #{rnn_model_forward.1} parent=0 // pred_region
    _
  $region13: #{rnn_model_forward.1} parent=0 // pred_fallthru
    _
  // Predicated region
  $region14: #{rnn_model_forward.1} parent=0 // pred_check
    _
  $region15: #{rnn_model_forward.1} parent=0 // pred_check_branch
    %20 = sbr.rel (0) target = $region17
  $region16: #{rnn_model_forward.1} parent=0 // pred_region
    _
  $region17: #{rnn_model_forward.1} parent=0 // pred_fallthru
    _
  // Predicated region
  $region18: #{rnn_model_forward.1} parent=0 // pred_check
    _
  $region19: #{rnn_model_forward.1} parent=0 // pred_check_branch
    %22 = sbr.rel (0) target = $region21
  $region20: #{rnn_model_forward.1} parent=0 // pred_region
    _
  $region21: #{rnn_model_forward.1} parent=0 // pred_fallthru
    _
  // Predicated region
  $region22: #{rnn_model_forward.1} parent=0 // pred_check
    _
  $region23: #{rnn_model_forward.1} parent=0 // pred_check_branch
    %24 = sbr.rel (0) target = $region25
  $region24: #{rnn_model_forward.1} parent=0 // pred_region
    _
  $region25: #{rnn_model_forward.1} parent=0 // pred_fallthru
    _
  // Predicated region
  $region26: #{rnn_model_forward.1} parent=0 // pred_check
    _
  $region27: #{rnn_model_forward.1} parent=0 // pred_check_branch
    %26 = sbr.rel (0) target = $region29
  $region28: #{rnn_model_forward.1} parent=0 // pred_region
    _
  $region29: #{rnn_model_forward.1} parent=0 // pred_fallthru
    _
  // Predicated region
  $region30: #{rnn_model_forward.1} parent=0 // pred_check
    _
  $region31: #{rnn_model_forward.1} parent=0 // pred_check_branch
    %28 = sbr.rel (0) target = $region33
  $region32: #{rnn_model_forward.1} parent=0 // pred_region
    _
  $region33: #{rnn_model_forward.1} parent=0 // pred_fallthru
    _
  %v30 = vld [vmem:[%s0] sm:$0xf]
  %v31 = vld [vmem:[%s0 + $0x4] sm:$0xf]
  %v32 = vld [vmem:[%s0 + $0x8] sm:$0xf]
  %v33 = vld [vmem:[%s0 + $0xc] sm:$0xf]
  %v34 = vld [vmem:[%s0 + $0x10] sm:$0xf]
  %v35 = vld [vmem:[%s0 + $0x14] sm:$0xf]
  %v36 = vld [vmem:[%s0 + $0x18] sm:$0xf]
  %v37 = vld [vmem:[%s0 + $0x1c] sm:$0xf]
  %v38 = vld [vmem:[%s1] sm:$0xf]
  %v39 = vld [vmem:[%s1 + $0x4] sm:$0xf]
  %v40 = vld [vmem:[%s1 + $0x8] sm:$0xf]
  %v41 = vld [vmem:[%s1 + $0xc] sm:$0xf]
  %v42 = vld [vmem:[%s1 + $0x10] sm:$0xf]
  %v43 = vld [vmem:[%s1 + $0x14] sm:$0xf]
  %v44 = vld [vmem:[%s1 + $0x18] sm:$0xf]
  %v45 = vld [vmem:[%s1 + $0x1c] sm:$0xf]
  %v46 = vld [vmem:[%s1 + $0x20] sm:$0xf]
  %v47 = vld [vmem:[%s1 + $0x24] sm:$0xf]
  %v48 = vld [vmem:[%s1 + $0x28] sm:$0xf]
  %v49 = vld [vmem:[%s1 + $0x2c] sm:$0xf]
  %v50 = vld [vmem:[%s1 + $0x30] sm:$0xf]
  %v51 = vld [vmem:[%s1 + $0x34] sm:$0xf]
  %v52 = vld [vmem:[%s1 + $0x38] sm:$0xf]
  %v53 = vld [vmem:[%s1 + $0x3c] sm:$0xf]
  %v54 = vld [vmem:[%s2] sm:$0x1]
  %v56 = vperm.slane %v54, 0
  %v66 = vunpack.c.l.b16 %v30
  %v67 = vunpack.c.l.b16 %v31
  %v68 = vunpack.c.l.b16 %v32
  %v69 = vunpack.c.l.b16 %v33
  %v70 = vunpack.c.l.b16 %v34
  %v71 = vunpack.c.l.b16 %v35
  %v72 = vunpack.c.l.b16 %v36
  %v73 = vunpack.c.l.b16 %v37
  %v74 = vpack.c.b16 %v67, %v66
  %v75 = vpack.c.b16 %v69, %v68
  %v76 = vpack.c.b16 %v71, %v70
  %v77 = vpack.c.b16 %v73, %v72
  %v98 = vunpack.c.l.b16 %v38
  %v99 = vunpack.c.l.b16 %v39
  %v100 = vunpack.c.l.b16 %v40
  %v101 = vunpack.c.l.b16 %v41
  %v102 = vunpack.c.l.b16 %v42
  %v103 = vunpack.c.l.b16 %v43
  %v104 = vunpack.c.l.b16 %v44
  %v105 = vunpack.c.l.b16 %v45
  %v106 = vunpack.c.l.b16 %v46
  %v107 = vunpack.c.l.b16 %v47
  %v108 = vunpack.c.l.b16 %v48
  %v109 = vunpack.c.l.b16 %v49
  %v110 = vunpack.c.l.b16 %v50
  %v111 = vunpack.c.l.b16 %v51
  %v112 = vunpack.c.l.b16 %v52
  %v113 = vunpack.c.l.b16 %v53
  %v114 = vpack.c.b16 %v99, %v98
  %v115 = vpack.c.b16 %v101, %v100
  %v116 = vpack.c.b16 %v103, %v102
  %v117 = vpack.c.b16 %v105, %v104
  %v118 = vpack.c.b16 %v107, %v106
  %v119 = vpack.c.b16 %v109, %v108
  %v120 = vpack.c.b16 %v111, %v110
  %v121 = vpack.c.b16 %v113, %v112
  %130 = vmatpush.bf16.msra.mxu0 %v121
  %131 = vmatpush.bf16.msra.mxu0 %v120
  %132 = vmatpush.bf16.msra.mxu0 %v119
  %133 = vmatpush.bf16.msra.mxu0 %v118
  %134 = vmatpush.bf16.msra.mxu0 %v117
  %135 = vmatpush.bf16.msra.mxu0 %v116
  %136 = vmatpush.bf16.msra.mxu0 %v115
  %137 = vmatpush.bf16.msra.mxu0 %v114
  %138 = vmatmul.bf16.gmra.mxu0 %v74
  %v139 = vpop.f32.mrf.mxu0
  %v140 = vadd.f32 %v56, %v139
  %v141 = vpop.f32.mrf.mxu0
  %v142 = vadd.f32 %v56, %v141
  %143 = vmatmul.bf16.gmra.mxu0 %v75
  %v144 = vpop.f32.mrf.mxu0
  %v145 = vadd.f32 %v56, %v144
  %v146 = vpop.f32.mrf.mxu0
  %v147 = vadd.f32 %v56, %v146
  %148 = vmatmul.bf16.gmra.mxu0 %v76
  %v149 = vpop.f32.mrf.mxu0
  %v150 = vadd.f32 %v56, %v149
  %v151 = vpop.f32.mrf.mxu0
  %v152 = vadd.f32 %v56, %v151
  %153 = vmatmul.bf16.gmra.mxu0 %v77
  %v154 = vpop.f32.mrf.mxu0
  %v155 = vadd.f32 %v56, %v154
  %v156 = vpop.f32.mrf.mxu0
  %v157 = vadd.f32 %v56, %v156
  %158 = vdwg.mxu0
  %v159 = vpack.c.bf16 %v140, %v140
  %v160 = vpack.c.bf16 %v142, %v142
  %v161 = vpack.c.bf16 %v145, %v145
  %v162 = vpack.c.bf16 %v147, %v147
  %v163 = vpack.c.bf16 %v150, %v150
  %v164 = vpack.c.bf16 %v152, %v152
  %v165 = vpack.c.bf16 %v155, %v155
  %v166 = vpack.c.bf16 %v157, %v157
  %167 = vst [vmem:[#allocation2] sm:$0xf] %v159
  %168 = vst [vmem:[#allocation2 + $0x4] sm:$0xf] %v160
  %169 = vst [vmem:[#allocation2 + $0x8] sm:$0xf] %v161
  %170 = vst [vmem:[#allocation2 + $0xc] sm:$0xf] %v162
  %171 = vst [vmem:[#allocation2 + $0x10] sm:$0xf] %v163
  %172 = vst [vmem:[#allocation2 + $0x14] sm:$0xf] %v164
  %173 = vst [vmem:[#allocation2 + $0x18] sm:$0xf] %v165
  %174 = vst [vmem:[#allocation2 + $0x1c] sm:$0xf] %v166
  %v175 = vld [vmem:[#allocation2] sm:$0xf]
  %v176 = vunpack.c.l.bf16 %v175
  %v177 = vld [vmem:[%s3] sm:$0xf]
  %v178 = vld [vmem:[%s3 + $0x4] sm:$0xf]
  %v179 = vld [vmem:[%s3 + $0x8] sm:$0xf]
  %v180 = vld [vmem:[%s3 + $0xc] sm:$0xf]
  %v181 = vld [vmem:[%s3 + $0x10] sm:$0xf]
  %v182 = vld [vmem:[%s3 + $0x14] sm:$0xf]
  %v183 = vld [vmem:[%s3 + $0x18] sm:$0xf]
  %v184 = vld [vmem:[%s3 + $0x1c] sm:$0xf]
  %v185 = vld [vmem:[%s3 + $0x20] sm:$0xf]
  %v186 = vld [vmem:[%s3 + $0x24] sm:$0xf]
  %v187 = vld [vmem:[%s3 + $0x28] sm:$0xf]
  %v188 = vld [vmem:[%s3 + $0x2c] sm:$0xf]
  %v189 = vld [vmem:[%s3 + $0x30] sm:$0xf]
  %v190 = vld [vmem:[%s3 + $0x34] sm:$0xf]
  %v191 = vld [vmem:[%s3 + $0x38] sm:$0xf]
  %v192 = vld [vmem:[%s3 + $0x3c] sm:$0xf]
  %v209 = vunpack.c.l.b16 %v177
  %v210 = vunpack.c.l.b16 %v178
  %v211 = vunpack.c.l.b16 %v179
  %v212 = vunpack.c.l.b16 %v180
  %v213 = vunpack.c.l.b16 %v181
  %v214 = vunpack.c.l.b16 %v182
  %v215 = vunpack.c.l.b16 %v183
  %v216 = vunpack.c.l.b16 %v184
  %v217 = vunpack.c.l.b16 %v185
  %v218 = vunpack.c.l.b16 %v186
  %v219 = vunpack.c.l.b16 %v187
  %v220 = vunpack.c.l.b16 %v188
  %v221 = vunpack.c.l.b16 %v189
  %v222 = vunpack.c.l.b16 %v190
  %v223 = vunpack.c.l.b16 %v191
  %v224 = vunpack.c.l.b16 %v192
  %v225 = vpack.c.b16 %v210, %v209
  %v226 = vpack.c.b16 %v212, %v211
  %v227 = vpack.c.b16 %v214, %v213
  %v228 = vpack.c.b16 %v216, %v215
  %v229 = vpack.c.b16 %v218, %v217
  %v230 = vpack.c.b16 %v220, %v219
  %v231 = vpack.c.b16 %v222, %v221
  %v232 = vpack.c.b16 %v224, %v223
  %241 = vmatpush.bf16.msra.mxu0 %v232
  %242 = vmatpush.bf16.msra.mxu0 %v231
  %243 = vmatpush.bf16.msra.mxu0 %v230
  %244 = vmatpush.bf16.msra.mxu0 %v229
  %245 = vmatpush.bf16.msra.mxu0 %v228
  %246 = vmatpush.bf16.msra.mxu0 %v227
  %247 = vmatpush.bf16.msra.mxu0 %v226
  %248 = vmatpush.bf16.msra.mxu0 %v225
  %249 = vmatmul.bf16.gmra.mxu0 0
  %v250 = vpop.f32.mrf.mxu0
  %v251 = vadd.f32 0.0, %v250
  %v252 = vpop.f32.mrf.mxu0
  %253 = vdwg.mxu0
  %v254 = vadd.f32 %v176, %v251
  %v255 = vtanh.pop %v254
  %v256 = vpack.c.bf16 %v255, %v255
  %v257 = vld [vmem:[%s4] sm:$0xf]
  %v258 = vld [vmem:[%s4 + $0x4] sm:$0xf]
  %v259 = vld [vmem:[%s4 + $0x8] sm:$0xf]
  %v260 = vld [vmem:[%s4 + $0xc] sm:$0xf]
  %v261 = vld [vmem:[%s4 + $0x10] sm:$0xf]
  %v262 = vld [vmem:[%s4 + $0x14] sm:$0xf]
  %v263 = vld [vmem:[%s4 + $0x18] sm:$0xf]
  %v264 = vld [vmem:[%s4 + $0x1c] sm:$0xf]
  %v265 = vld [vmem:[%s4 + $0x20] sm:$0xf]
  %v266 = vld [vmem:[%s4 + $0x24] sm:$0xf]
  %v267 = vld [vmem:[%s4 + $0x28] sm:$0xf]
  %v268 = vld [vmem:[%s4 + $0x2c] sm:$0xf]
  %v269 = vld [vmem:[%s4 + $0x30] sm:$0xf]
  %v270 = vld [vmem:[%s4 + $0x34] sm:$0xf]
  %v271 = vld [vmem:[%s4 + $0x38] sm:$0xf]
  %v272 = vld [vmem:[%s4 + $0x3c] sm:$0xf]
  %s273 = scalar_lea.vmem %s3, 64
  %v274 = vld [vmem:[%s273] sm:$0xf]
  %v275 = vld [vmem:[%s273 + $0x4] sm:$0xf]
  %v276 = vld [vmem:[%s273 + $0x8] sm:$0xf]
  %v277 = vld [vmem:[%s273 + $0xc] sm:$0xf]
  %v278 = vld [vmem:[%s273 + $0x10] sm:$0xf]
  %v279 = vld [vmem:[%s273 + $0x14] sm:$0xf]
  %v280 = vld [vmem:[%s273 + $0x18] sm:$0xf]
  %v281 = vld [vmem:[%s273 + $0x1c] sm:$0xf]
  %v282 = vld [vmem:[%s273 + $0x20] sm:$0xf]
  %v283 = vld [vmem:[%s273 + $0x24] sm:$0xf]
  %v284 = vld [vmem:[%s273 + $0x28] sm:$0xf]
  %v285 = vld [vmem:[%s273 + $0x2c] sm:$0xf]
  %v286 = vld [vmem:[%s273 + $0x30] sm:$0xf]
  %v287 = vld [vmem:[%s273 + $0x34] sm:$0xf]
  %v288 = vld [vmem:[%s273 + $0x38] sm:$0xf]
  %v289 = vld [vmem:[%s273 + $0x3c] sm:$0xf]
  %v306 = vunpack.c.l.b16 %v274
  %v307 = vunpack.c.l.b16 %v275
  %v308 = vunpack.c.l.b16 %v276
  %v309 = vunpack.c.l.b16 %v277
  %v310 = vunpack.c.l.b16 %v278
  %v311 = vunpack.c.l.b16 %v279
  %v312 = vunpack.c.l.b16 %v280
  %v313 = vunpack.c.l.b16 %v281
  %v314 = vunpack.c.l.b16 %v282
  %v315 = vunpack.c.l.b16 %v283
  %v316 = vunpack.c.l.b16 %v284
  %v317 = vunpack.c.l.b16 %v285
  %v318 = vunpack.c.l.b16 %v286
  %v319 = vunpack.c.l.b16 %v287
  %v320 = vunpack.c.l.b16 %v288
  %v321 = vunpack.c.l.b16 %v289
  %v322 = vpack.c.b16 %v307, %v306
  %v323 = vpack.c.b16 %v309, %v308
  %v324 = vpack.c.b16 %v311, %v310
  %v325 = vpack.c.b16 %v313, %v312
  %v326 = vpack.c.b16 %v315, %v314
  %v327 = vpack.c.b16 %v317, %v316
  %v328 = vpack.c.b16 %v319, %v318
  %v329 = vpack.c.b16 %v321, %v320
  %338 = vmatpush.bf16.msra.mxu0 %v329
  %339 = vmatpush.bf16.msra.mxu0 %v328
  %340 = vmatpush.bf16.msra.mxu0 %v327
  %341 = vmatpush.bf16.msra.mxu0 %v326
  %342 = vmatpush.bf16.msra.mxu0 %v325
  %343 = vmatpush.bf16.msra.mxu0 %v324
  %344 = vmatpush.bf16.msra.mxu0 %v323
  %345 = vmatpush.bf16.msra.mxu0 %v322
  %346 = vmatmul.bf16.gmra.mxu0 0
  %v347 = vpop.f32.mrf.mxu0
  %v348 = vadd.f32 0.0, %v347
  %v349 = vpop.f32.mrf.mxu0
  %350 = vdwg.mxu0
  %v367 = vunpack.c.l.b16 %v257
  %v368 = vunpack.c.l.b16 %v258
  %v369 = vunpack.c.l.b16 %v259
  %v370 = vunpack.c.l.b16 %v260
  %v371 = vunpack.c.l.b16 %v261
  %v372 = vunpack.c.l.b16 %v262
  %v373 = vunpack.c.l.b16 %v263
  %v374 = vunpack.c.l.b16 %v264
  %v375 = vunpack.c.l.b16 %v265
  %v376 = vunpack.c.l.b16 %v266
  %v377 = vunpack.c.l.b16 %v267
  %v378 = vunpack.c.l.b16 %v268
  %v379 = vunpack.c.l.b16 %v269
  %v380 = vunpack.c.l.b16 %v270
  %v381 = vunpack.c.l.b16 %v271
  %v382 = vunpack.c.l.b16 %v272
  %v383 = vpack.c.b16 %v368, %v367
  %v384 = vpack.c.b16 %v370, %v369
  %v385 = vpack.c.b16 %v372, %v371
  %v386 = vpack.c.b16 %v374, %v373
  %v387 = vpack.c.b16 %v376, %v375
  %v388 = vpack.c.b16 %v378, %v377
  %v389 = vpack.c.b16 %v380, %v379
  %v390 = vpack.c.b16 %v382, %v381
  %399 = vmatpush.bf16.msra.mxu0 %v390
  %400 = vmatpush.bf16.msra.mxu0 %v389
  %401 = vmatpush.bf16.msra.mxu0 %v388
  %402 = vmatpush.bf16.msra.mxu0 %v387
  %403 = vmatpush.bf16.msra.mxu0 %v386
  %404 = vmatpush.bf16.msra.mxu0 %v385
  %405 = vmatpush.bf16.msra.mxu0 %v384
  %406 = vmatpush.bf16.msra.mxu0 %v383
  %407 = vmatmul.bf16.gmra.mxu0 %v256
  %v408 = vpop.f32.mrf.mxu0
  %v409 = vadd.f32 %v348, %v408
  %v410 = vpop.f32.mrf.mxu0
  %411 = vdwg.mxu0
  %v412 = vld [vmem:[%s5] sm:$0xff]
  %v413 = vadd.f32 %v409, %v412
  %v414 = vtanh.pop %v413
  %s415 = scalar_lea.vmem [#allocation2], 4
  %v416 = vld [vmem:[%s415] sm:$0xf]
  %v417 = vunpack.c.l.bf16 %v416
  %418 = vmatpush.bf16.msra.mxu0 %v232
  %419 = vmatpush.bf16.msra.mxu0 %v231
  %420 = vmatpush.bf16.msra.mxu0 %v230
  %421 = vmatpush.bf16.msra.mxu0 %v229
  %422 = vmatpush.bf16.msra.mxu0 %v228
  %423 = vmatpush.bf16.msra.mxu0 %v227
  %424 = vmatpush.bf16.msra.mxu0 %v226
  %425 = vmatpush.bf16.msra.mxu0 %v225
  %426 = vmatmul.bf16.gmra.mxu0 %v256
  %v427 = vpop.f32.mrf.mxu0
  %v428 = vadd.f32 0.0, %v427
  %v429 = vpop.f32.mrf.mxu0
  %430 = vdwg.mxu0
  %v431 = vadd.f32 %v417, %v428
  %v432 = vtanh.pop %v431
  %v433 = vpack.c.bf16 %v432, %v432
  %v434 = vpack.c.bf16 %v414, %v414
  %435 = vmatpush.bf16.msra.mxu0 %v329
  %436 = vmatpush.bf16.msra.mxu0 %v328
  %437 = vmatpush.bf16.msra.mxu0 %v327
  %438 = vmatpush.bf16.msra.mxu0 %v326
  %439 = vmatpush.bf16.msra.mxu0 %v325
  %440 = vmatpush.bf16.msra.mxu0 %v324
  %441 = vmatpush.bf16.msra.mxu0 %v323
  %442 = vmatpush.bf16.msra.mxu0 %v322
  %443 = vmatmul.bf16.gmra.mxu0 %v434
  %v444 = vpop.f32.mrf.mxu0
  %v445 = vadd.f32 0.0, %v444
  %v446 = vpop.f32.mrf.mxu0
  %447 = vdwg.mxu0
  %448 = vmatpush.bf16.msra.mxu0 %v390
  %449 = vmatpush.bf16.msra.mxu0 %v389
  %450 = vmatpush.bf16.msra.mxu0 %v388
  %451 = vmatpush.bf16.msra.mxu0 %v387
  %452 = vmatpush.bf16.msra.mxu0 %v386
  %453 = vmatpush.bf16.msra.mxu0 %v385
  %454 = vmatpush.bf16.msra.mxu0 %v384
  %455 = vmatpush.bf16.msra.mxu0 %v383
  %456 = vmatmul.bf16.gmra.mxu0 %v433
  %v457 = vpop.f32.mrf.mxu0
  %v458 = vadd.f32 %v445, %v457
  %v459 = vpop.f32.mrf.mxu0
  %460 = vdwg.mxu0
  %v461 = vadd.f32 %v458, %v412
  %v462 = vtanh.pop %v461
  %s463 = scalar_lea.vmem [#allocation2], 8
  %v464 = vld [vmem:[%s463] sm:$0xf]
  %v465 = vunpack.c.l.bf16 %v464
  %466 = vmatpush.bf16.msra.mxu0 %v232
  %467 = vmatpush.bf16.msra.mxu0 %v231
  %468 = vmatpush.bf16.msra.mxu0 %v230
  %469 = vmatpush.bf16.msra.mxu0 %v229
  %470 = vmatpush.bf16.msra.mxu0 %v228
  %471 = vmatpush.bf16.msra.mxu0 %v227
  %472 = vmatpush.bf16.msra.mxu0 %v226
  %473 = vmatpush.bf16.msra.mxu0 %v225
  %474 = vmatmul.bf16.gmra.mxu0 %v433
  %v475 = vpop.f32.mrf.mxu0
  %v476 = vadd.f32 0.0, %v475
  %v477 = vpop.f32.mrf.mxu0
  %478 = vdwg.mxu0
  %v479 = vadd.f32 %v465, %v476
  %v480 = vtanh.pop %v479
  %v481 = vpack.c.bf16 %v480, %v480
  %v482 = vpack.c.bf16 %v462, %v462
  %483 = vmatpush.bf16.msra.mxu0 %v329
  %484 = vmatpush.bf16.msra.mxu0 %v328
  %485 = vmatpush.bf16.msra.mxu0 %v327
  %486 = vmatpush.bf16.msra.mxu0 %v326
  %487 = vmatpush.bf16.msra.mxu0 %v325
  %488 = vmatpush.bf16.msra.mxu0 %v324
  %489 = vmatpush.bf16.msra.mxu0 %v323
  %490 = vmatpush.bf16.msra.mxu0 %v322
  %491 = vmatmul.bf16.gmra.mxu0 %v482
  %v492 = vpop.f32.mrf.mxu0
  %v493 = vadd.f32 0.0, %v492
  %v494 = vpop.f32.mrf.mxu0
  %495 = vdwg.mxu0
  %496 = vmatpush.bf16.msra.mxu0 %v390
  %497 = vmatpush.bf16.msra.mxu0 %v389
  %498 = vmatpush.bf16.msra.mxu0 %v388
  %499 = vmatpush.bf16.msra.mxu0 %v387
  %500 = vmatpush.bf16.msra.mxu0 %v386
  %501 = vmatpush.bf16.msra.mxu0 %v385
  %502 = vmatpush.bf16.msra.mxu0 %v384
  %503 = vmatpush.bf16.msra.mxu0 %v383
  %504 = vmatmul.bf16.gmra.mxu0 %v481
  %v505 = vpop.f32.mrf.mxu0
  %v506 = vadd.f32 %v493, %v505
  %v507 = vpop.f32.mrf.mxu0
  %508 = vdwg.mxu0
  %v509 = vadd.f32 %v506, %v412
  %v510 = vtanh.pop %v509
  %s511 = scalar_lea.vmem [#allocation2], 12
  %v512 = vld [vmem:[%s511] sm:$0xf]
  %v513 = vunpack.c.l.bf16 %v512
  %514 = vmatpush.bf16.msra.mxu0 %v232
  %515 = vmatpush.bf16.msra.mxu0 %v231
  %516 = vmatpush.bf16.msra.mxu0 %v230
  %517 = vmatpush.bf16.msra.mxu0 %v229
  %518 = vmatpush.bf16.msra.mxu0 %v228
  %519 = vmatpush.bf16.msra.mxu0 %v227
  %520 = vmatpush.bf16.msra.mxu0 %v226
  %521 = vmatpush.bf16.msra.mxu0 %v225
  %522 = vmatmul.bf16.gmra.mxu0 %v481
  %v523 = vpop.f32.mrf.mxu0
  %v524 = vadd.f32 0.0, %v523
  %v525 = vpop.f32.mrf.mxu0
  %526 = vdwg.mxu0
  %v527 = vadd.f32 %v513, %v524
  %v528 = vtanh.pop %v527
  %v529 = vpack.c.bf16 %v528, %v528
  %v530 = vpack.c.bf16 %v510, %v510
  %531 = vmatpush.bf16.msra.mxu0 %v329
  %532 = vmatpush.bf16.msra.mxu0 %v328
  %533 = vmatpush.bf16.msra.mxu0 %v327
  %534 = vmatpush.bf16.msra.mxu0 %v326
  %535 = vmatpush.bf16.msra.mxu0 %v325
  %536 = vmatpush.bf16.msra.mxu0 %v324
  %537 = vmatpush.bf16.msra.mxu0 %v323
  %538 = vmatpush.bf16.msra.mxu0 %v322
  %539 = vmatmul.bf16.gmra.mxu0 %v530
  %v540 = vpop.f32.mrf.mxu0
  %v541 = vadd.f32 0.0, %v540
  %v542 = vpop.f32.mrf.mxu0
  %543 = vdwg.mxu0
  %544 = vmatpush.bf16.msra.mxu0 %v390
  %545 = vmatpush.bf16.msra.mxu0 %v389
  %546 = vmatpush.bf16.msra.mxu0 %v388
  %547 = vmatpush.bf16.msra.mxu0 %v387
  %548 = vmatpush.bf16.msra.mxu0 %v386
  %549 = vmatpush.bf16.msra.mxu0 %v385
  %550 = vmatpush.bf16.msra.mxu0 %v384
  %551 = vmatpush.bf16.msra.mxu0 %v383
  %552 = vmatmul.bf16.gmra.mxu0 %v529
  %v553 = vpop.f32.mrf.mxu0
  %v554 = vadd.f32 %v541, %v553
  %v555 = vpop.f32.mrf.mxu0
  %556 = vdwg.mxu0
  %v557 = vadd.f32 %v554, %v412
  %v558 = vtanh.pop %v557
  %s559 = scalar_lea.vmem [#allocation2], 16
  %v560 = vld [vmem:[%s559] sm:$0xf]
  %v561 = vunpack.c.l.bf16 %v560
  %562 = vmatpush.bf16.msra.mxu0 %v232
  %563 = vmatpush.bf16.msra.mxu0 %v231
  %564 = vmatpush.bf16.msra.mxu0 %v230
  %565 = vmatpush.bf16.msra.mxu0 %v229
  %566 = vmatpush.bf16.msra.mxu0 %v228
  %567 = vmatpush.bf16.msra.mxu0 %v227
  %568 = vmatpush.bf16.msra.mxu0 %v226
  %569 = vmatpush.bf16.msra.mxu0 %v225
  %570 = vmatmul.bf16.gmra.mxu0 %v529
  %v571 = vpop.f32.mrf.mxu0
  %v572 = vadd.f32 0.0, %v571
  %v573 = vpop.f32.mrf.mxu0
  %574 = vdwg.mxu0
  %v575 = vadd.f32 %v561, %v572
  %v576 = vtanh.pop %v575
  %v577 = vpack.c.bf16 %v576, %v576
  %v578 = vpack.c.bf16 %v558, %v558
  %579 = vmatpush.bf16.msra.mxu0 %v329
  %580 = vmatpush.bf16.msra.mxu0 %v328
  %581 = vmatpush.bf16.msra.mxu0 %v327
  %582 = vmatpush.bf16.msra.mxu0 %v326
  %583 = vmatpush.bf16.msra.mxu0 %v325
  %584 = vmatpush.bf16.msra.mxu0 %v324
  %585 = vmatpush.bf16.msra.mxu0 %v323
  %586 = vmatpush.bf16.msra.mxu0 %v322
  %587 = vmatmul.bf16.gmra.mxu0 %v578
  %v588 = vpop.f32.mrf.mxu0
  %v589 = vadd.f32 0.0, %v588
  %v590 = vpop.f32.mrf.mxu0
  %591 = vdwg.mxu0
  %592 = vmatpush.bf16.msra.mxu0 %v390
  %593 = vmatpush.bf16.msra.mxu0 %v389
  %594 = vmatpush.bf16.msra.mxu0 %v388
  %595 = vmatpush.bf16.msra.mxu0 %v387
  %596 = vmatpush.bf16.msra.mxu0 %v386
  %597 = vmatpush.bf16.msra.mxu0 %v385
  %598 = vmatpush.bf16.msra.mxu0 %v384
  %599 = vmatpush.bf16.msra.mxu0 %v383
  %600 = vmatmul.bf16.gmra.mxu0 %v577
  %v601 = vpop.f32.mrf.mxu0
  %v602 = vadd.f32 %v589, %v601
  %v603 = vpop.f32.mrf.mxu0
  %604 = vdwg.mxu0
  %v605 = vadd.f32 %v602, %v412
  %v606 = vtanh.pop %v605
  %s607 = scalar_lea.vmem [#allocation2], 20
  %v608 = vld [vmem:[%s607] sm:$0xf]
  %v609 = vunpack.c.l.bf16 %v608
  %610 = vmatpush.bf16.msra.mxu0 %v232
  %611 = vmatpush.bf16.msra.mxu0 %v231
  %612 = vmatpush.bf16.msra.mxu0 %v230
  %613 = vmatpush.bf16.msra.mxu0 %v229
  %614 = vmatpush.bf16.msra.mxu0 %v228
  %615 = vmatpush.bf16.msra.mxu0 %v227
  %616 = vmatpush.bf16.msra.mxu0 %v226
  %617 = vmatpush.bf16.msra.mxu0 %v225
  %618 = vmatmul.bf16.gmra.mxu0 %v577
  %v619 = vpop.f32.mrf.mxu0
  %v620 = vadd.f32 0.0, %v619
  %v621 = vpop.f32.mrf.mxu0
  %622 = vdwg.mxu0
  %v623 = vadd.f32 %v609, %v620
  %v624 = vtanh.pop %v623
  %v625 = vpack.c.bf16 %v624, %v624
  %v626 = vpack.c.bf16 %v606, %v606
  %627 = vmatpush.bf16.msra.mxu0 %v329
  %628 = vmatpush.bf16.msra.mxu0 %v328
  %629 = vmatpush.bf16.msra.mxu0 %v327
  %630 = vmatpush.bf16.msra.mxu0 %v326
  %631 = vmatpush.bf16.msra.mxu0 %v325
  %632 = vmatpush.bf16.msra.mxu0 %v324
  %633 = vmatpush.bf16.msra.mxu0 %v323
  %634 = vmatpush.bf16.msra.mxu0 %v322
  %635 = vmatmul.bf16.gmra.mxu0 %v626
  %v636 = vpop.f32.mrf.mxu0
  %v637 = vadd.f32 0.0, %v636
  %v638 = vpop.f32.mrf.mxu0
  %639 = vdwg.mxu0
  %640 = vmatpush.bf16.msra.mxu0 %v390
  %641 = vmatpush.bf16.msra.mxu0 %v389
  %642 = vmatpush.bf16.msra.mxu0 %v388
  %643 = vmatpush.bf16.msra.mxu0 %v387
  %644 = vmatpush.bf16.msra.mxu0 %v386
  %645 = vmatpush.bf16.msra.mxu0 %v385
  %646 = vmatpush.bf16.msra.mxu0 %v384
  %647 = vmatpush.bf16.msra.mxu0 %v383
  %648 = vmatmul.bf16.gmra.mxu0 %v625
  %v649 = vpop.f32.mrf.mxu0
  %v650 = vadd.f32 %v637, %v649
  %v651 = vpop.f32.mrf.mxu0
  %652 = vdwg.mxu0
  %v653 = vadd.f32 %v650, %v412
  %v654 = vtanh.pop %v653
  %s655 = scalar_lea.vmem [#allocation2], 24
  %v656 = vld [vmem:[%s655] sm:$0xf]
  %v657 = vunpack.c.l.bf16 %v656
  %658 = vmatpush.bf16.msra.mxu0 %v232
  %659 = vmatpush.bf16.msra.mxu0 %v231
  %660 = vmatpush.bf16.msra.mxu0 %v230
  %661 = vmatpush.bf16.msra.mxu0 %v229
  %662 = vmatpush.bf16.msra.mxu0 %v228
  %663 = vmatpush.bf16.msra.mxu0 %v227
  %664 = vmatpush.bf16.msra.mxu0 %v226
  %665 = vmatpush.bf16.msra.mxu0 %v225
  %666 = vmatmul.bf16.gmra.mxu0 %v625
  %v667 = vpop.f32.mrf.mxu0
  %v668 = vadd.f32 0.0, %v667
  %v669 = vpop.f32.mrf.mxu0
  %670 = vdwg.mxu0
  %v671 = vadd.f32 %v657, %v668
  %v672 = vtanh.pop %v671
  %v673 = vpack.c.bf16 %v672, %v672
  %v674 = vpack.c.bf16 %v654, %v654
  %675 = vmatpush.bf16.msra.mxu0 %v329
  %676 = vmatpush.bf16.msra.mxu0 %v328
  %677 = vmatpush.bf16.msra.mxu0 %v327
  %678 = vmatpush.bf16.msra.mxu0 %v326
  %679 = vmatpush.bf16.msra.mxu0 %v325
  %680 = vmatpush.bf16.msra.mxu0 %v324
  %681 = vmatpush.bf16.msra.mxu0 %v323
  %682 = vmatpush.bf16.msra.mxu0 %v322
  %683 = vmatmul.bf16.gmra.mxu0 %v674
  %v684 = vpop.f32.mrf.mxu0
  %v685 = vadd.f32 0.0, %v684
  %v686 = vpop.f32.mrf.mxu0
  %687 = vdwg.mxu0
  %688 = vmatpush.bf16.msra.mxu0 %v390
  %689 = vmatpush.bf16.msra.mxu0 %v389
  %690 = vmatpush.bf16.msra.mxu0 %v388
  %691 = vmatpush.bf16.msra.mxu0 %v387
  %692 = vmatpush.bf16.msra.mxu0 %v386
  %693 = vmatpush.bf16.msra.mxu0 %v385
  %694 = vmatpush.bf16.msra.mxu0 %v384
  %695 = vmatpush.bf16.msra.mxu0 %v383
  %696 = vmatmul.bf16.gmra.mxu0 %v673
  %v697 = vpop.f32.mrf.mxu0
  %v698 = vadd.f32 %v685, %v697
  %v699 = vpop.f32.mrf.mxu0
  %700 = vdwg.mxu0
  %v701 = vadd.f32 %v698, %v412
  %v702 = vtanh.pop %v701
  %s703 = scalar_lea.vmem [#allocation2], 28
  %v704 = vld [vmem:[%s703] sm:$0xf]
  %v705 = vunpack.c.l.bf16 %v704
  %706 = vmatpush.bf16.msra.mxu0 %v232
  %707 = vmatpush.bf16.msra.mxu0 %v231
  %708 = vmatpush.bf16.msra.mxu0 %v230
  %709 = vmatpush.bf16.msra.mxu0 %v229
  %710 = vmatpush.bf16.msra.mxu0 %v228
  %711 = vmatpush.bf16.msra.mxu0 %v227
  %712 = vmatpush.bf16.msra.mxu0 %v226
  %713 = vmatpush.bf16.msra.mxu0 %v225
  %714 = vmatmul.bf16.gmra.mxu0 %v673
  %v715 = vpop.f32.mrf.mxu0
  %v716 = vadd.f32 0.0, %v715
  %v717 = vpop.f32.mrf.mxu0
  %718 = vdwg.mxu0
  %v719 = vadd.f32 %v705, %v716
  %v720 = vtanh.pop %v719
  %v721 = vpack.c.bf16 %v720, %v720
  %v722 = vpack.c.bf16 %v702, %v702
  %723 = vmatpush.bf16.msra.mxu0 %v329
  %724 = vmatpush.bf16.msra.mxu0 %v328
  %725 = vmatpush.bf16.msra.mxu0 %v327
  %726 = vmatpush.bf16.msra.mxu0 %v326
  %727 = vmatpush.bf16.msra.mxu0 %v325
  %728 = vmatpush.bf16.msra.mxu0 %v324
  %729 = vmatpush.bf16.msra.mxu0 %v323
  %730 = vmatpush.bf16.msra.mxu0 %v322
  %731 = vmatmul.bf16.gmra.mxu0 %v722
  %v732 = vpop.f32.mrf.mxu0
  %v733 = vadd.f32 0.0, %v732
  %v734 = vpop.f32.mrf.mxu0
  %735 = vdwg.mxu0
  %736 = vmatpush.bf16.msra.mxu0 %v390
  %737 = vmatpush.bf16.msra.mxu0 %v389
  %738 = vmatpush.bf16.msra.mxu0 %v388
  %739 = vmatpush.bf16.msra.mxu0 %v387
  %740 = vmatpush.bf16.msra.mxu0 %v386
  %741 = vmatpush.bf16.msra.mxu0 %v385
  %742 = vmatpush.bf16.msra.mxu0 %v384
  %743 = vmatpush.bf16.msra.mxu0 %v383
  %744 = vmatmul.bf16.gmra.mxu0 %v721
  %v745 = vpop.f32.mrf.mxu0
  %v746 = vadd.f32 %v733, %v745
  %v747 = vpop.f32.mrf.mxu0
  %748 = vdwg.mxu0
  %v749 = vadd.f32 %v746, %v412
  %v750 = vtanh.pop %v749
  %v751 = vpack.c.bf16 %v750, %v750
  %v752 = vld [vmem:[%s6] sm:$0xf]
  %v753 = vld [vmem:[%s6 + $0x4] sm:$0xf]
  %v754 = vld [vmem:[%s6 + $0x8] sm:$0xf]
  %v755 = vld [vmem:[%s6 + $0xc] sm:$0xf]
  %v756 = vld [vmem:[%s6 + $0x10] sm:$0xf]
  %v757 = vld [vmem:[%s6 + $0x14] sm:$0xf]
  %v758 = vld [vmem:[%s6 + $0x18] sm:$0xf]
  %v759 = vld [vmem:[%s6 + $0x1c] sm:$0xf]
  %v760 = vld [vmem:[%s6 + $0x20] sm:$0xf]
  %v761 = vld [vmem:[%s6 + $0x24] sm:$0xf]
  %v762 = vld [vmem:[%s6 + $0x28] sm:$0xf]
  %v763 = vld [vmem:[%s6 + $0x2c] sm:$0xf]
  %v764 = vld [vmem:[%s6 + $0x30] sm:$0xf]
  %v765 = vld [vmem:[%s6 + $0x34] sm:$0xf]
  %v766 = vld [vmem:[%s6 + $0x38] sm:$0xf]
  %v767 = vld [vmem:[%s6 + $0x3c] sm:$0xf]
  %v768 = vld [vmem:[%s7] sm:$0x1]
  %v770 = vperm.slane %v768, 0
  %v788 = vunpack.c.l.b16 %v752
  %v789 = vunpack.c.l.b16 %v753
  %v790 = vunpack.c.l.b16 %v754
  %v791 = vunpack.c.l.b16 %v755
  %v792 = vunpack.c.l.b16 %v756
  %v793 = vunpack.c.l.b16 %v757
  %v794 = vunpack.c.l.b16 %v758
  %v795 = vunpack.c.l.b16 %v759
  %v796 = vunpack.c.l.b16 %v760
  %v797 = vunpack.c.l.b16 %v761
  %v798 = vunpack.c.l.b16 %v762
  %v799 = vunpack.c.l.b16 %v763
  %v800 = vunpack.c.l.b16 %v764
  %v801 = vunpack.c.l.b16 %v765
  %v802 = vunpack.c.l.b16 %v766
  %v803 = vunpack.c.l.b16 %v767
  %v804 = vpack.c.b16 %v789, %v788
  %v805 = vpack.c.b16 %v791, %v790
  %v806 = vpack.c.b16 %v793, %v792
  %v807 = vpack.c.b16 %v795, %v794
  %v808 = vpack.c.b16 %v797, %v796
  %v809 = vpack.c.b16 %v799, %v798
  %v810 = vpack.c.b16 %v801, %v800
  %v811 = vpack.c.b16 %v803, %v802
  %820 = vmatpush.bf16.msra.mxu0 %v811
  %821 = vmatpush.bf16.msra.mxu0 %v810
  %822 = vmatpush.bf16.msra.mxu0 %v809
  %823 = vmatpush.bf16.msra.mxu0 %v808
  %824 = vmatpush.bf16.msra.mxu0 %v807
  %825 = vmatpush.bf16.msra.mxu0 %v806
  %826 = vmatpush.bf16.msra.mxu0 %v805
  %827 = vmatpush.bf16.msra.mxu0 %v804
  %828 = vmatmul.bf16.gmra.mxu0 %v751
  %v829 = vpop.f32.mrf.mxu0
  %v830 = vadd.f32 %v770, %v829
  %v831 = vpop.f32.mrf.mxu0
  %832 = vdwg.mxu0
  %833 = vst [vmem:[%s8] sm:$0xff] %v830
  // Predicated region
  $region34: #{rnn_model_forward.1} parent=0 // pred_check
    _
  $region35: #{rnn_model_forward.1} parent=0 // pred_check_branch
    %835 = sbr.rel (0) target = $region37
  $region36: #{rnn_model_forward.1} parent=0 // pred_region
    _
  $region37: #{rnn_model_forward.1} parent=0 // pred_fallthru
    _
  // Predicated region
  $region38: #{rnn_model_forward.1} parent=0 // pred_check
    _
  $region39: #{rnn_model_forward.1} parent=0 // pred_check_branch
    %837 = sbr.rel (0) target = $region41
  $region40: #{rnn_model_forward.1} parent=0 // pred_region
    _
  $region41: #{rnn_model_forward.1} parent=0 // pred_fallthru
    _

</llo_original>
